<compile_context>
chip_gen: v7x
topology: tpu7x:2x2x1
jax: 0.10.0
libtpu: 0.0.40
codegen_flags: <defaults>
</compile_context>

<pallas_src>
import jax
import jax.numpy as jnp
from jax.experimental import pallas as pl
from jax.experimental.pallas import tpu as pltpu

HIDDEN = 128              # fc1 / fc2 width (fixed by the PyTorch module)
HEAD_HIDDEN = 64          # value/advantage head hidden width
HEAD_W = 2 * HEAD_HIDDEN  # fused value|advantage hidden width per head (=128)


def _round_up(x, m):
    return -(-x // m) * m


def dueling_kernel(x_ref, w1_ref, w2_ref, wh1_ref, wq_ref, b_ref, q_ref):
    """One batch-chunk of the whole forward: 4 lane-dense MXU matmuls."""
    nh = wh1_ref.shape[1]           # num_tls * HEAD_W (multiple of 128)
    out_w = q_ref.shape[1]          # lane-dense output width (multiple of 128)
    f32 = jnp.float32

    # Static, 128-aligned slices of the fused bias slab (cheap ref views).
    b1 = b_ref[:, 0:HIDDEN].astype(f32)
    b2 = b_ref[:, HIDDEN:2 * HIDDEN].astype(f32)
    bh1 = b_ref[:, 2 * HIDDEN:2 * HIDDEN + nh].astype(f32)
    bq = b_ref[:, 2 * HIDDEN + nh:2 * HIDDEN + nh + out_w].astype(f32)

    # Shared trunk: fc1 + ReLU, fc2 + ReLU.
    h = jnp.dot(x_ref[...], w1_ref[...].astype(f32), preferred_element_type=f32)
    h = jnp.maximum(h + b1, 0.0)
    h = jnp.dot(h, w2_ref[...].astype(f32), preferred_element_type=f32)
    h = jnp.maximum(h + b2, 0.0)
    # All heads: value|advantage hidden layers fused along lanes -> [bm, nh].
    z = jnp.dot(h, wh1_ref[...].astype(f32), preferred_element_type=f32)
    z = jnp.maximum(z + bh1, 0.0)
    # Final block-diagonal layer with the dueling combine folded in -> [bm, out_w].
    q_ref[...] = jnp.dot(z, wq_ref[...].astype(f32),
                         preferred_element_type=f32) + bq


def pack_params(params, output_sizes, weight_dtype=jnp.float32):
    """Pack per-head DuelingDQN params into 4 weight matrices + 1 bias slab.

    The dueling combine  q_j = v + a_j - mean_k(a_k)  is linear in (v, a), so
    it is folded directly into the last Linear layer's weight/bias.
    """
    (w1, b1, w2, b2, wv1s, bv1s, wv2s, bv2s, wa1s, ba1s, wa2s, ba2s) = params
    num_tls = len(output_sizes)
    smax = max(output_sizes)

    # Head layer 1: [HIDDEN, num_tls * HEAD_W], per head [wv1 | wa1].
    wh1 = jnp.concatenate(
        [jnp.concatenate([wv1s[i], wa1s[i]], axis=1) for i in range(num_tls)],
        axis=1)
    bh1 = jnp.concatenate(
        [jnp.concatenate([bv1s[i], ba1s[i]], axis=1) for i in range(num_tls)],
        axis=1)

    # Head layer 2, block-diagonal, dueling combine folded in.
    out_cols = num_tls * smax
    out_pad = max(128, _round_up(out_cols, 128))   # lane-dense output width
    wq = jnp.zeros((num_tls * HEAD_W, out_pad), jnp.float32)
    bq = jnp.zeros((1, out_pad), jnp.float32)
    for i, s in enumerate(output_sizes):
        # Combine matrix C: rows = [value, adv_0..adv_{smax-1}], cols = q_0..q_{smax-1}.
        C = jnp.zeros((1 + smax, smax), jnp.float32)
        C = C.at[0, :s].set(1.0)
        C = C.at[1:1 + s, :s].set(jnp.eye(s, dtype=jnp.float32) - 1.0 / s)
        # Per-head second-layer weight [HEAD_W, 1 + smax]: col 0 = value head.
        w2h = jnp.zeros((HEAD_W, 1 + smax), jnp.float32)
        w2h = w2h.at[:HEAD_HIDDEN, 0].set(wv2s[i][:, 0])
        w2h = w2h.at[HEAD_HIDDEN:, 1:].set(wa2s[i])
        b2h = jnp.concatenate([bv2s[i], ba2s[i]], axis=1)          # [1, 1+smax]
        wq = wq.at[i * HEAD_W:(i + 1) * HEAD_W,
                   i * smax:(i + 1) * smax].set(w2h @ C)
        bq = bq.at[:, i * smax:(i + 1) * smax].set(b2h @ C)

    # One fused [1, 128 + 128 + num_tls*128 + out_pad] bias slab (128-aligned).
    bias = jnp.concatenate([b1, b2, bh1, bq], axis=1)
    packed = tuple(a.astype(weight_dtype) for a in (w1, w2, wh1, wq, bias))
    return packed, out_pad


def dueling_dqn_forward(x, packed, output_sizes, out_pad, *,
                        block_m=128, return_packed=False):
    """Runs the fused forward. Returns per-head Q lists (or the packed slab)."""
    w1, w2, wh1, wq, bias = packed
    B, in_size = x.shape

    # Pad batch to full sublanes and tile it into `block_m`-row grid steps.
    bm = min(_round_up(block_m, 8), _round_up(B, 8))
    b_pad = _round_up(B, bm)
    if b_pad != B:
        x = jnp.pad(x, ((0, b_pad - B), (0, 0)))
    grid = (b_pad // bm,)

    q_padded = pl.pallas_call(
        dueling_kernel,
        out_shape=jax.ShapeDtypeStruct((b_pad, out_pad), jnp.float32),
        grid=grid,
        in_specs=[
            pl.BlockSpec((bm, in_size), lambda i: (i, 0)),
            # Constant block indices -> weights stay VMEM-resident across steps.
            pl.BlockSpec(w1.shape, lambda i: (0, 0)),
            pl.BlockSpec(w2.shape, lambda i: (0, 0)),
            pl.BlockSpec(wh1.shape, lambda i: (0, 0)),
            pl.BlockSpec(wq.shape, lambda i: (0, 0)),
            pl.BlockSpec(bias.shape, lambda i: (0, 0)),
        ],
        out_specs=pl.BlockSpec((bm, out_pad), lambda i: (i, 0)),
        compiler_params=pltpu.CompilerParams(
            dimension_semantics=("parallel",)),   # v7x: shard chunks over 2 TCs
    )(x, w1, w2, wh1, wq, bias)

    q_padded = q_padded[:B]
    smax = max(output_sizes)
    if return_packed:
        # Packed slab + static (offset, size) metadata; avoids per-head slicing.
        return q_padded, [(i * smax, s) for i, s in enumerate(output_sizes)]
    return [q_padded[:, i * smax:i * smax + s]
            for i, s in enumerate(output_sizes)]


# ----------------------- deterministic parameter init -----------------------
def _kaiming_uniform(key, fan_in, shape):
    # matches nn.init.kaiming_uniform_(..., nonlinearity='relu'): U(-b, b),
    # b = sqrt(6 / fan_in)
    bound = (6.0 / fan_in) ** 0.5
    return jax.random.uniform(key, shape, jnp.float32, -bound, bound)


def init_params(key, input_size, output_sizes):
    num_tls = len(output_sizes)
    smax = max(output_sizes)
    keys = jax.random.split(key, 2 + 4 * num_tls)

    w1 = _kaiming_uniform(keys[0], input_size, (input_size, HIDDEN))
    b1 = jnp.zeros((1, HIDDEN), jnp.float32)
    w2 = _kaiming_uniform(keys[1], HIDDEN, (HIDDEN, HIDDEN))
    b2 = jnp.zeros((1, HIDDEN), jnp.float32)

    wv1s, wv2s, wa1s, wa2s = [], [], [], []
    for i, size in enumerate(output_sizes):
        k = keys[2 + 4 * i: 2 + 4 * (i + 1)]
        wv1s.append(_kaiming_uniform(k[0], HIDDEN, (HIDDEN, HEAD_HIDDEN)))
        wv2s.append(_kaiming_uniform(k[1], HEAD_HIDDEN, (HEAD_HIDDEN, 1)))
        wa1s.append(_kaiming_uniform(k[2], HIDDEN, (HIDDEN, HEAD_HIDDEN)))
        wa2 = _kaiming_uniform(k[3], HEAD_HIDDEN, (HEAD_HIDDEN, size))
        wa2s.append(jnp.pad(wa2, ((0, 0), (0, smax - size))))  # pad to Smax

    wv1s = jnp.stack(wv1s)
    bv1s = jnp.zeros((num_tls, 1, HEAD_HIDDEN), jnp.float32)
    wv2s = jnp.stack(wv2s)
    bv2s = jnp.zeros((num_tls, 1, 1), jnp.float32)
    wa1s = jnp.stack(wa1s)
    ba1s = jnp.zeros((num_tls, 1, HEAD_HIDDEN), jnp.float32)
    wa2s = jnp.stack(wa2s)
    ba2s = jnp.zeros((num_tls, 1, smax), jnp.float32)

    return (w1, b1, w2, b2, wv1s, bv1s, wv2s, bv2s, wa1s, ba1s, wa2s, ba2s)


def reference_forward(x, params, output_sizes):
    """Pure-JAX reference with the ORIGINAL (un-fused) per-head parameters."""
    (w1, b1, w2, b2, wv1s, bv1s, wv2s, bv2s, wa1s, ba1s, wa2s, ba2s) = params
    h = jax.nn.relu(x @ w1 + b1)
    h = jax.nn.relu(h @ w2 + b2)
    outs = []
    for i, s in enumerate(output_sizes):
        v1 = jax.nn.relu(h @ wv1s[i] + bv1s[i])
        v = v1 @ wv2s[i] + bv2s[i]
        a1 = jax.nn.relu(h @ wa1s[i] + ba1s[i])
        adv = (a1 @ wa2s[i] + ba2s[i])[:, :s]
        outs.append(v + adv - adv.mean(axis=1, keepdims=True))
    return outs


# TODO(synk): get_actions / TrafficLightAction is host-side env glue (argmax +
# Python objects), not part of the tensor forward pass; not implemented here.

if __name__ == "__main__":
    key = jax.random.PRNGKey(0)
    kx, kp = jax.random.split(key)

    batch = 4
    input_size = 32
    output_sizes = [4, 6, 3]          # one traffic light per head
    x = jax.random.normal(kx, (batch, input_size), jnp.float32)

    params = init_params(kp, input_size, output_sizes)
    q_ref = reference_forward(x, params, output_sizes)

    # --- f32 weights: strict check (small batch, padded to 8 rows inside). ---
    packed_f32, out_pad = pack_params(params, output_sizes, jnp.float32)
    q_list = jax.block_until_ready(
        dueling_dqn_forward(x, packed_f32, output_sizes, out_pad))
    for q, r, s in zip(q_list, q_ref, output_sizes):
        assert q.shape == (batch, s), q.shape
        assert jnp.allclose(q, r, atol=1e-4, rtol=1e-4)

    # --- bf16 weights (halves weight HBM bytes; v5e win): looser check. ---
    packed_bf16, _ = pack_params(params, output_sizes, jnp.bfloat16)
    q_bf16 = jax.block_until_ready(
        dueling_dqn_forward(x, packed_bf16, output_sizes, out_pad))
    for q, r in zip(q_bf16, q_ref):
        assert jnp.allclose(q, r, atol=5e-2, rtol=5e-2)

    # --- Larger batch through the grid path: block_m=64 -> grid=(2,), weights
    #     stay VMEM-resident across steps; "parallel" axis uses both v7x TCs. ---
    big_b = 128
    xb = jax.random.normal(kx, (big_b, input_size), jnp.float32)
    qb = jax.block_until_ready(
        dueling_dqn_forward(xb, packed_f32, output_sizes, out_pad, block_m=64))
    qb_ref = reference_forward(xb, params, output_sizes)
    for q, r in zip(qb, qb_ref):
        assert jnp.allclose(q, r, atol=1e-4, rtol=1e-4)

    print("KERNEL_OK")
</pallas_src>

<mosaic_0001>
module attributes {stable_mosaic.version = 11 : i64} {
  func.func @dueling_kernel(%arg0: i32, %arg1: memref<8x32xf32, #tpu.memory_space<vmem>>, %arg2: memref<32x128xf32, #tpu.memory_space<vmem>>, %arg3: memref<128x128xf32, #tpu.memory_space<vmem>>, %arg4: memref<128x384xf32, #tpu.memory_space<vmem>>, %arg5: memref<384x128xf32, #tpu.memory_space<vmem>>, %arg6: memref<1x768xf32, #tpu.memory_space<vmem>>, %arg7: memref<8x128xf32, #tpu.memory_space<vmem>>) attributes {dimension_semantics = [#tpu.dimension_semantics<parallel>], iteration_bounds = array<i64: 1>, scalar_prefetch = 0 : i64, scratch_operands = 0 : i64, tpu.core_type = #tpu.core_type<tc>, window_params = [{transform_indices = @transform_0, window_bounds = array<i64: 8, 32>}, {pipeline_mode = #tpu.pipeline_mode<synchronous>, transform_indices = @transform_1, window_bounds = array<i64: 32, 128>}, {pipeline_mode = #tpu.pipeline_mode<synchronous>, transform_indices = @transform_2, window_bounds = array<i64: 128, 128>}, {pipeline_mode = #tpu.pipeline_mode<synchronous>, transform_indices = @transform_3, window_bounds = array<i64: 128, 384>}, {pipeline_mode = #tpu.pipeline_mode<synchronous>, transform_indices = @transform_4, window_bounds = array<i64: 384, 128>}, {pipeline_mode = #tpu.pipeline_mode<synchronous>, transform_indices = @transform_5, window_bounds = array<i64: 1, 768>}, {transform_indices = @transform_6, window_bounds = array<i64: 8, 128>}]} {
    %c0 = arith.constant 0 : index
    %c0_0 = arith.constant 0 : index
    %0 = vector.load %arg6[%c0, %c0_0] : memref<1x768xf32, #tpu.memory_space<vmem>>, vector<1x128xf32>
    %c0_1 = arith.constant 0 : index
    %c128 = arith.constant 128 : index
    %1 = vector.load %arg6[%c0_1, %c128] : memref<1x768xf32, #tpu.memory_space<vmem>>, vector<1x128xf32>
    %c0_2 = arith.constant 0 : index
    %c256 = arith.constant 256 : index
    %2 = vector.load %arg6[%c0_2, %c256] : memref<1x768xf32, #tpu.memory_space<vmem>>, vector<1x384xf32>
    %c0_3 = arith.constant 0 : index
    %c640 = arith.constant 640 : index
    %3 = vector.load %arg6[%c0_3, %c640] : memref<1x768xf32, #tpu.memory_space<vmem>>, vector<1x128xf32>
    %c0_4 = arith.constant 0 : index
    %c0_5 = arith.constant 0 : index
    %4 = vector.load %arg1[%c0_4, %c0_5] : memref<8x32xf32, #tpu.memory_space<vmem>>, vector<8x32xf32>
    %c0_6 = arith.constant 0 : index
    %c0_7 = arith.constant 0 : index
    %5 = vector.load %arg2[%c0_6, %c0_7] : memref<32x128xf32, #tpu.memory_space<vmem>>, vector<32x128xf32>
    %cst = arith.constant dense<0.000000e+00> : vector<8x128xf32>
    %6 = tpu.matmul %4, %5, %cst {dimension_numbers = #tpu.dot_dimension_numbers<[1], [0], [0], [1], [0, 0, 1, 1], [], []>} : vector<8x32xf32>, vector<32x128xf32>, vector<8x128xf32> -> vector<8x128xf32>
    %7 = vector.broadcast %0 : vector<1x128xf32> to vector<8x128xf32>
    %8 = arith.addf %6, %7 : vector<8x128xf32>
    %cst_8 = arith.constant 0.000000e+00 : f32
    %9 = vector.broadcast %cst_8 : f32 to vector<8x128xf32>
    %10 = arith.maximumf %8, %9 : vector<8x128xf32>
    %c0_9 = arith.constant 0 : index
    %c0_10 = arith.constant 0 : index
    %11 = vector.load %arg3[%c0_9, %c0_10] : memref<128x128xf32, #tpu.memory_space<vmem>>, vector<128x128xf32>
    %cst_11 = arith.constant dense<0.000000e+00> : vector<8x128xf32>
    %12 = tpu.matmul %10, %11, %cst_11 {dimension_numbers = #tpu.dot_dimension_numbers<[1], [0], [0], [1], [0, 0, 1, 1], [], []>} : vector<8x128xf32>, vector<128x128xf32>, vector<8x128xf32> -> vector<8x128xf32>
    %13 = vector.broadcast %1 : vector<1x128xf32> to vector<8x128xf32>
    %14 = arith.addf %12, %13 : vector<8x128xf32>
    %cst_12 = arith.constant 0.000000e+00 : f32
    %15 = vector.broadcast %cst_12 : f32 to vector<8x128xf32>
    %16 = arith.maximumf %14, %15 : vector<8x128xf32>
    %c0_13 = arith.constant 0 : index
    %c0_14 = arith.constant 0 : index
    %17 = vector.load %arg4[%c0_13, %c0_14] : memref<128x384xf32, #tpu.memory_space<vmem>>, vector<128x384xf32>
    %cst_15 = arith.constant dense<0.000000e+00> : vector<8x384xf32>
    %18 = tpu.matmul %16, %17, %cst_15 {dimension_numbers = #tpu.dot_dimension_numbers<[1], [0], [0], [1], [0, 0, 1, 1], [], []>} : vector<8x128xf32>, vector<128x384xf32>, vector<8x384xf32> -> vector<8x384xf32>
    %19 = vector.broadcast %2 : vector<1x384xf32> to vector<8x384xf32>
    %20 = arith.addf %18, %19 : vector<8x384xf32>
    %cst_16 = arith.constant 0.000000e+00 : f32
    %21 = vector.broadcast %cst_16 : f32 to vector<8x384xf32>
    %22 = arith.maximumf %20, %21 : vector<8x384xf32>
    %c0_17 = arith.constant 0 : index
    %c0_18 = arith.constant 0 : index
    %23 = vector.load %arg5[%c0_17, %c0_18] : memref<384x128xf32, #tpu.memory_space<vmem>>, vector<384x128xf32>
    %cst_19 = arith.constant dense<0.000000e+00> : vector<8x128xf32>
    %24 = tpu.matmul %22, %23, %cst_19 {dimension_numbers = #tpu.dot_dimension_numbers<[1], [0], [0], [1], [0, 0, 1, 1], [], []>} : vector<8x384xf32>, vector<384x128xf32>, vector<8x128xf32> -> vector<8x128xf32>
    %25 = vector.broadcast %3 : vector<1x128xf32> to vector<8x128xf32>
    %26 = arith.addf %24, %25 : vector<8x128xf32>
    %c0_20 = arith.constant 0 : index
    %c0_21 = arith.constant 0 : index
    %27 = vector.load %arg7[%c0_20, %c0_21] : memref<8x128xf32, #tpu.memory_space<vmem>>, vector<8x128xf32>
    tpu.vector_store %arg7[%c0_20, %c0_21], %26 {strides = array<i32>} : memref<8x128xf32, #tpu.memory_space<vmem>>, vector<8x128xf32>,
    return
  }
  func.func @transform_0(%arg0: i32) -> (i32, i32) {
    %c0_i32 = arith.constant 0 : i32
    %c0_i32_0 = arith.constant 0 : i32
    return %arg0, %c0_i32 : i32, i32
  }
  func.func @transform_1(%arg0: i32) -> (i32, i32) {
    %c0_i32 = arith.constant 0 : i32
    %c0_i32_0 = arith.constant 0 : i32
    %c0_i32_1 = arith.constant 0 : i32
    return %c0_i32, %c0_i32_0 : i32, i32
  }
  func.func @transform_2(%arg0: i32) -> (i32, i32) {
    %c0_i32 = arith.constant 0 : i32
    %c0_i32_0 = arith.constant 0 : i32
    %c0_i32_1 = arith.constant 0 : i32
    return %c0_i32, %c0_i32_0 : i32, i32
  }
  func.func @transform_3(%arg0: i32) -> (i32, i32) {
    %c0_i32 = arith.constant 0 : i32
    %c0_i32_0 = arith.constant 0 : i32
    %c0_i32_1 = arith.constant 0 : i32
    return %c0_i32, %c0_i32_0 : i32, i32
  }
  func.func @transform_4(%arg0: i32) -> (i32, i32) {
    %c0_i32 = arith.constant 0 : i32
    %c0_i32_0 = arith.constant 0 : i32
    %c0_i32_1 = arith.constant 0 : i32
    return %c0_i32, %c0_i32_0 : i32, i32
  }
  func.func @transform_5(%arg0: i32) -> (i32, i32) {
    %c0_i32 = arith.constant 0 : i32
    %c0_i32_0 = arith.constant 0 : i32
    %c0_i32_1 = arith.constant 0 : i32
    return %c0_i32, %c0_i32_0 : i32, i32
  }
  func.func @transform_6(%arg0: i32) -> (i32, i32) {
    %c0_i32 = arith.constant 0 : i32
    %c0_i32_0 = arith.constant 0 : i32
    return %arg0, %c0_i32 : i32, i32
  }
}

</mosaic_0001>

<llo_original>
// kernel: tpu_custom_call.1
$region0: #{tpu_custom_call.1}
  #allocation0 [shape = 'u32[]', space=smem, size = 0x4, offset = 0x4, fixed_abs, tag = 'smem constant byte address 0x4 - core index']
  #allocation1 [shape = 'u32[144,128]{1,0:T(1,128)}', space=vmem, size = 0x12000, scoped, tag = 'internal scratch']
  %s0 = inlined_call_operand.hbm [shape: f32[8,32], index: 0, kind: input, shape index: {}]
  %s1 = inlined_call_operand.hbm [shape: f32[32,128], index: 1, kind: input, shape index: {}]
  %s2 = inlined_call_operand.hbm [shape: f32[128,128], index: 2, kind: input, shape index: {}]
  %s3 = inlined_call_operand.hbm [shape: f32[128,384], index: 3, kind: input, shape index: {}]
  %s4 = inlined_call_operand.hbm [shape: f32[384,128], index: 4, kind: input, shape index: {}]
  %s5 = inlined_call_operand.vmem [shape: f32[1,768], index: 5, kind: input, shape index: {}]
  %s6 = inlined_call_operand.hbm [shape: f32[8,128], index: 6, kind: output, shape index: {}]
  %s7 = sld [smem:[#allocation0]]
  $region54: #{tpu_custom_call.1} parent=0
    _
  %s9 = ssub.s32 1, %s7
  %s10 = scalar_select 0, %s9, %s7
  $region1: #{tpu_custom_call.1} parent=0
    #allocation2 [shape = 'u8[4096]{0}', space=vmem, size = 0x1000, scoped, tag = 'input window, operand 0, single buffered']
    #allocation3 [shape = 's32[1]{0}', space=sflag, size = 0x4, scoped, tag = 'scoped memory for tpu_custom_call.1']
    #allocation4 [shape = 's32[1]{0}', space=sflag, size = 0x4, scoped, tag = 'scoped memory for tpu_custom_call.1']
    #allocation5 [shape = 'u8[16384]{0}', space=vmem, size = 0x4000, scoped, tag = 'input window, operand 1, single buffered']
    #allocation6 [shape = 's32[1]{0}', space=sflag, size = 0x4, scoped, tag = 'scoped memory for tpu_custom_call.1']
    #allocation7 [shape = 'u8[65536]{0}', space=vmem, size = 0x10000, scoped, tag = 'input window, operand 2, single buffered']
    #allocation8 [shape = 'u8[196608]{0}', space=vmem, size = 0x30000, scoped, tag = 'input window, operand 3, single buffered']
    #allocation9 [shape = 's32[1]{0}', space=sflag, size = 0x4, scoped, tag = 'scoped memory for tpu_custom_call.1']
    #allocation10 [shape = 'u8[196608]{0}', space=vmem, size = 0x30000, scoped, tag = 'input window, operand 4, single buffered']
    #allocation11 [shape = 'u8[4096]{0}', space=vmem, size = 0x1000, scoped, tag = 'output window, operand 0, single buffered']
    %11 = vsyncpa [#allocation3], 0
    %12 = vsyncpa [#allocation6], 0
    %13 = vsyncpa [#allocation9], 0
    %14 = vsyncpa [#allocation4], 0
    // Predicated region
    $region2: #{tpu_custom_call.1} parent=1 // pred_check
      _
    $region3: #{tpu_custom_call.1} parent=1 // pred_check_branch
      %16 = sbr.rel (0) target = $region5
    $region4: #{tpu_custom_call.1} parent=1 // pred_region
      %s18 = ssub.s32 128, 128
      %19 = vsyncadd [#allocation3], %s18
      %s21 = sshll.u32 [#allocation2], 4
      %s22 = int_to_ptr.vmem [resolvable:$true] %s21
      %24 = dma.hbm_to_vmem [thread:$0]  %s0, 128, %s22, [#allocation3]
    $region5: #{tpu_custom_call.1} parent=1 // pred_fallthru
      _
    // Predicated region
    $region6: #{tpu_custom_call.1} parent=1 // pred_check
      _
    $region7: #{tpu_custom_call.1} parent=1 // pred_check_branch
      %26 = sbr.rel (0) target = $region9
    $region8: #{tpu_custom_call.1} parent=1 // pred_region
      %s28 = ssub.s32 512, 512
      %29 = vsyncadd [#allocation6], %s28
      %s30 = sshll.u32 [#allocation5], 4
      %s31 = int_to_ptr.vmem [resolvable:$true] %s30
      %36 = dma.hbm_to_vmem [thread:$0]  %s1, 512, %s31, [#allocation6], 128, 128, 8
    $region9: #{tpu_custom_call.1} parent=1 // pred_fallthru
      _
    // Predicated region
    $region10: #{tpu_custom_call.1} parent=1 // pred_check
      _
    $region11: #{tpu_custom_call.1} parent=1 // pred_check_branch
      %38 = sbr.rel (0) target = $region13
    $region12: #{tpu_custom_call.1} parent=1 // pred_region
      %s40 = ssub.s32 2048, 2048
      %41 = vsyncadd [#allocation6], %s40
      %s42 = sshll.u32 [#allocation7], 4
      %s43 = int_to_ptr.vmem [resolvable:$true] %s42
      %48 = dma.hbm_to_vmem [thread:$0]  %s2, 2048, %s43, [#allocation6], 128, 128, 8
    $region13: #{tpu_custom_call.1} parent=1 // pred_fallthru
      _
    // Predicated region
    $region14: #{tpu_custom_call.1} parent=1 // pred_check
      _
    $region15: #{tpu_custom_call.1} parent=1 // pred_check_branch
      %50 = sbr.rel (0) target = $region17
    $region16: #{tpu_custom_call.1} parent=1 // pred_region
      %s52 = ssub.s32 6144, 6144
      %53 = vsyncadd [#allocation9], %s52
      %s54 = sshll.u32 [#allocation8], 4
      %s55 = int_to_ptr.vmem [resolvable:$true] %s54
      %60 = dma.hbm_to_vmem [thread:$0]  %s3, 6144, %s55, [#allocation9], 384, 384, 24
    $region17: #{tpu_custom_call.1} parent=1 // pred_fallthru
      _
    // Predicated region
    $region18: #{tpu_custom_call.1} parent=1 // pred_check
      _
    $region19: #{tpu_custom_call.1} parent=1 // pred_check_branch
      %62 = sbr.rel (0) target = $region21
    $region20: #{tpu_custom_call.1} parent=1 // pred_region
      %s64 = ssub.s32 6144, 6144
      %65 = vsyncadd [#allocation9], %s64
      %s66 = sshll.u32 [#allocation10], 4
      %s67 = int_to_ptr.vmem [resolvable:$true] %s66
      %72 = dma.hbm_to_vmem [thread:$0]  %s4, 6144, %s67, [#allocation9], 128, 128, 8
    $region21: #{tpu_custom_call.1} parent=1 // pred_fallthru
      _
    // Predicated region
    $region22: #{tpu_custom_call.1} parent=1 // pred_check
      _
    $region23: #{tpu_custom_call.1} parent=1 // pred_check_branch
      %74 = sbr.rel (0) target = $region25
    $region24: #{tpu_custom_call.1} parent=1 // pred_region
      _
    $region25: #{tpu_custom_call.1} parent=1 // pred_fallthru
      _
    // Predicated region
    $region26: #{tpu_custom_call.1} parent=1 // pred_check
      _
    $region27: #{tpu_custom_call.1} parent=1 // pred_check_branch
      %76 = sbr.rel (0) target = $region29
    $region28: #{tpu_custom_call.1} parent=1 // pred_region
      %77 = dma.done [#allocation3], 128
    $region29: #{tpu_custom_call.1} parent=1 // pred_fallthru
      _
    // Predicated region
    $region30: #{tpu_custom_call.1} parent=1 // pred_check
      _
    $region31: #{tpu_custom_call.1} parent=1 // pred_check_branch
      %79 = sbr.rel (0) target = $region33
    $region32: #{tpu_custom_call.1} parent=1 // pred_region
      %80 = dma.done [#allocation6], 512
    $region33: #{tpu_custom_call.1} parent=1 // pred_fallthru
      _
    // Predicated region
    $region34: #{tpu_custom_call.1} parent=1 // pred_check
      _
    $region35: #{tpu_custom_call.1} parent=1 // pred_check_branch
      %82 = sbr.rel (0) target = $region37
    $region36: #{tpu_custom_call.1} parent=1 // pred_region
      %83 = dma.done [#allocation6], 2048
    $region37: #{tpu_custom_call.1} parent=1 // pred_fallthru
      _
    // Predicated region
    $region38: #{tpu_custom_call.1} parent=1 // pred_check
      _
    $region39: #{tpu_custom_call.1} parent=1 // pred_check_branch
      %85 = sbr.rel (0) target = $region41
    $region40: #{tpu_custom_call.1} parent=1 // pred_region
      %86 = dma.done [#allocation9], 6144
    $region41: #{tpu_custom_call.1} parent=1 // pred_fallthru
      _
    // Predicated region
    $region42: #{tpu_custom_call.1} parent=1 // pred_check
      _
    $region43: #{tpu_custom_call.1} parent=1 // pred_check_branch
      %88 = sbr.rel (0) target = $region45
    $region44: #{tpu_custom_call.1} parent=1 // pred_region
      %89 = dma.done [#allocation9], 6144
    $region45: #{tpu_custom_call.1} parent=1 // pred_fallthru
      _
    %v90 = vld [vmem:[%s5] sm:$0x1]
    %v91 = vld [vmem:[%s5 + $0x1] sm:$0x1]
    %v92 = vld [vmem:[%s5 + $0x2] sm:$0x7]
    %v93 = vld [vmem:[%s5 + $0x5] sm:$0x1]
    %v94 = vld [vmem:[#allocation2] sm:$0xff]
    %v95 = vld [vmem:[#allocation5] sm:$0xff]
    %v96 = vld [vmem:[#allocation5 + $0x8] sm:$0xff]
    %v97 = vld [vmem:[#allocation5 + $0x10] sm:$0xff]
    %v98 = vld [vmem:[#allocation5 + $0x18] sm:$0xff]
    %v100 = vlaneseq
    %v101 = vshrl.u32 %v100, 7
    %v102 = vsub.s32 0, %v101
    %v103 = vrot.slane %v90, %v102
    %vm105 = vcmask 261120
    %v107 = vsel %vm105, %v94, 0
    %109 = vmatprep.subr.mxu0 0.0
    %110 = vmatpush1.msra.mxu0 %v95
    %111 = vmatprep.subr.mxu0 0.0
    %112 = vmatpush1.msra.mxu0 %v96
    %113 = vmatprep.subr.mxu0 0.0
    %114 = vmatpush1.msra.mxu0 %v97
    %115 = vmatprep.subr.mxu0 0.0
    %116 = vmatpush1.msra.mxu0 %v98
    %117 = vmatprep.subr.mxu0 0.0
    %118 = vmatpush1.msra.mxu0 0.0
    %119 = vmatprep.subr.mxu0 0.0
    %120 = vmatpush1.msra.mxu0 0.0
    %121 = vmatprep.subr.mxu0 0.0
    %122 = vmatpush1.msra.mxu0 0.0
    %123 = vmatprep.subr.mxu0 0.0
    %124 = vmatpush1.msra.mxu0 0.0
    %125 = vmatprep.subr.mxu0 0.0
    %126 = vmatpush1.msra.mxu0 0.0
    %127 = vmatprep.subr.mxu0 0.0
    %128 = vmatpush1.msra.mxu0 0.0
    %129 = vmatprep.subr.mxu0 0.0
    %130 = vmatpush1.msra.mxu0 0.0
    %131 = vmatprep.subr.mxu0 0.0
    %132 = vmatpush1.msra.mxu0 0.0
    %133 = vmatprep.subr.mxu0 0.0
    %134 = vmatpush1.msra.mxu0 0.0
    %135 = vmatprep.subr.mxu0 0.0
    %136 = vmatpush1.msra.mxu0 0.0
    %137 = vmatprep.subr.mxu0 0.0
    %138 = vmatpush1.msra.mxu0 0.0
    %139 = vmatprep.subr.mxu0 0.0
    %140 = vmatpush1.msra.mxu0 0.0
    %141 = vmatprep.subr.mxu0 0.0
    %142 = vmatpush1.msra.mxu0 0.0
    %143 = vmatprep.subr.mxu0 0.0
    %144 = vmatpush1.msra.mxu0 0.0
    %145 = vmatprep.subr.mxu0 0.0
    %146 = vmatpush1.msra.mxu0 0.0
    %147 = vmatprep.subr.mxu0 0.0
    %148 = vmatpush1.msra.mxu0 0.0
    %149 = vmatprep.subr.mxu0 0.0
    %150 = vmatpush1.msra.mxu0 0.0
    %151 = vmatprep.subr.mxu0 0.0
    %152 = vmatpush1.msra.mxu0 0.0
    %153 = vmatprep.subr.mxu0 0.0
    %154 = vmatpush1.msra.mxu0 0.0
    %155 = vmatprep.subr.mxu0 0.0
    %156 = vmatpush1.msra.mxu0 0.0
    %157 = vmatprep.subr.mxu0 0.0
    %158 = vmatpush1.msra.mxu0 0.0
    %159 = vmatprep.subr.mxu0 0.0
    %160 = vmatpush1.msra.mxu0 0.0
    %161 = vmatprep.subr.mxu0 0.0
    %162 = vmatpush1.msra.mxu0 0.0
    %163 = vmatprep.subr.mxu0 0.0
    %164 = vmatpush1.msra.mxu0 0.0
    %165 = vmatprep.subr.mxu0 0.0
    %166 = vmatpush1.msra.mxu0 0.0
    %167 = vmatprep.subr.mxu0 0.0
    %168 = vmatpush1.msra.mxu0 0.0
    %169 = vmatprep.subr.mxu0 0.0
    %170 = vmatpush1.msra.mxu0 0.0
    %171 = vmatprep.subr.mxu0 0.0
    %172 = vmatpush1.msra.mxu0 0.0
    %173 = vmatprep.mubr.f32.mxu0 0.0
    %174 = vmatmul.mubr.f32.gmra.mrb[0].mxu0 %v107
    %v175 = vpop.f32.mrb[0].mxu0
    %v176 = vadd.f32 %v103, %v175
    %v177 = vpop.f32.mrb[0].mxu0
    %178 = vdwg.mxu0
    %v179 = vmax.f32 %v176, 0.0
    %v180 = vld [vmem:[#allocation7] sm:$0xff]
    %v181 = vld [vmem:[#allocation7 + $0x8] sm:$0xff]
    %v182 = vld [vmem:[#allocation7 + $0x10] sm:$0xff]
    %v183 = vld [vmem:[#allocation7 + $0x18] sm:$0xff]
    %v184 = vld [vmem:[#allocation7 + $0x20] sm:$0xff]
    %v185 = vld [vmem:[#allocation7 + $0x28] sm:$0xff]
    %v186 = vld [vmem:[#allocation7 + $0x30] sm:$0xff]
    %v187 = vld [vmem:[#allocation7 + $0x38] sm:$0xff]
    %v188 = vld [vmem:[#allocation7 + $0x40] sm:$0xff]
    %v189 = vld [vmem:[#allocation7 + $0x48] sm:$0xff]
    %v190 = vld [vmem:[#allocation7 + $0x50] sm:$0xff]
    %v191 = vld [vmem:[#allocation7 + $0x58] sm:$0xff]
    %v192 = vld [vmem:[#allocation7 + $0x60] sm:$0xff]
    %v193 = vld [vmem:[#allocation7 + $0x68] sm:$0xff]
    %v194 = vld [vmem:[#allocation7 + $0x70] sm:$0xff]
    %v195 = vld [vmem:[#allocation7 + $0x78] sm:$0xff]
    %v197 = vlaneseq
    %v198 = vshrl.u32 %v197, 7
    %v199 = vsub.s32 0, %v198
    %v200 = vrot.slane %v91, %v199
    %202 = vmatprep.subr.mxu0 0.0
    %203 = vmatpush1.msra.mxu0 %v180
    %204 = vmatprep.subr.mxu0 0.0
    %205 = vmatpush1.msra.mxu0 %v181
    %206 = vmatprep.subr.mxu0 0.0
    %207 = vmatpush1.msra.mxu0 %v182
    %208 = vmatprep.subr.mxu0 0.0
    %209 = vmatpush1.msra.mxu0 %v183
    %210 = vmatprep.subr.mxu0 0.0
    %211 = vmatpush1.msra.mxu0 %v184
    %212 = vmatprep.subr.mxu0 0.0
    %213 = vmatpush1.msra.mxu0 %v185
    %214 = vmatprep.subr.mxu0 0.0
    %215 = vmatpush1.msra.mxu0 %v186
    %216 = vmatprep.subr.mxu0 0.0
    %217 = vmatpush1.msra.mxu0 %v187
    %218 = vmatprep.subr.mxu0 0.0
    %219 = vmatpush1.msra.mxu0 %v188
    %220 = vmatprep.subr.mxu0 0.0
    %221 = vmatpush1.msra.mxu0 %v189
    %222 = vmatprep.subr.mxu0 0.0
    %223 = vmatpush1.msra.mxu0 %v190
    %224 = vmatprep.subr.mxu0 0.0
    %225 = vmatpush1.msra.mxu0 %v191
    %226 = vmatprep.subr.mxu0 0.0
    %227 = vmatpush1.msra.mxu0 %v192
    %228 = vmatprep.subr.mxu0 0.0
    %229 = vmatpush1.msra.mxu0 %v193
    %230 = vmatprep.subr.mxu0 0.0
    %231 = vmatpush1.msra.mxu0 %v194
    %232 = vmatprep.subr.mxu0 0.0
    %233 = vmatpush1.msra.mxu0 %v195
    %234 = vmatprep.subr.mxu0 0.0
    %235 = vmatpush1.msra.mxu0 0.0
    %236 = vmatprep.subr.mxu0 0.0
    %237 = vmatpush1.msra.mxu0 0.0
    %238 = vmatprep.subr.mxu0 0.0
    %239 = vmatpush1.msra.mxu0 0.0
    %240 = vmatprep.subr.mxu0 0.0
    %241 = vmatpush1.msra.mxu0 0.0
    %242 = vmatprep.subr.mxu0 0.0
    %243 = vmatpush1.msra.mxu0 0.0
    %244 = vmatprep.subr.mxu0 0.0
    %245 = vmatpush1.msra.mxu0 0.0
    %246 = vmatprep.subr.mxu0 0.0
    %247 = vmatpush1.msra.mxu0 0.0
    %248 = vmatprep.subr.mxu0 0.0
    %249 = vmatpush1.msra.mxu0 0.0
    %250 = vmatprep.subr.mxu0 0.0
    %251 = vmatpush1.msra.mxu0 0.0
    %252 = vmatprep.subr.mxu0 0.0
    %253 = vmatpush1.msra.mxu0 0.0
    %254 = vmatprep.subr.mxu0 0.0
    %255 = vmatpush1.msra.mxu0 0.0
    %256 = vmatprep.subr.mxu0 0.0
    %257 = vmatpush1.msra.mxu0 0.0
    %258 = vmatprep.subr.mxu0 0.0
    %259 = vmatpush1.msra.mxu0 0.0
    %260 = vmatprep.subr.mxu0 0.0
    %261 = vmatpush1.msra.mxu0 0.0
    %262 = vmatprep.subr.mxu0 0.0
    %263 = vmatpush1.msra.mxu0 0.0
    %264 = vmatprep.subr.mxu0 0.0
    %265 = vmatpush1.msra.mxu0 0.0
    %266 = vmatprep.mubr.f32.mxu0 0.0
    %267 = vmatmul.mubr.f32.gmra.mrb[0].mxu0 %v179
    %v268 = vpop.f32.mrb[0].mxu0
    %v269 = vadd.f32 %v200, %v268
    %v270 = vpop.f32.mrb[0].mxu0
    %271 = vdwg.mxu0
    %v272 = vmax.f32 %v269, 0.0
    %v273 = vld [vmem:[#allocation8] sm:$0xff]
    %v274 = vld [vmem:[#allocation8 + $0x8] sm:$0xff]
    %v275 = vld [vmem:[#allocation8 + $0x10] sm:$0xff]
    %v276 = vld [vmem:[#allocation8 + $0x18] sm:$0xff]
    %v277 = vld [vmem:[#allocation8 + $0x20] sm:$0xff]
    %v278 = vld [vmem:[#allocation8 + $0x28] sm:$0xff]
    %v279 = vld [vmem:[#allocation8 + $0x30] sm:$0xff]
    %v280 = vld [vmem:[#allocation8 + $0x38] sm:$0xff]
    %v281 = vld [vmem:[#allocation8 + $0x40] sm:$0xff]
    %v282 = vld [vmem:[#allocation8 + $0x48] sm:$0xff]
    %v283 = vld [vmem:[#allocation8 + $0x50] sm:$0xff]
    %v284 = vld [vmem:[#allocation8 + $0x58] sm:$0xff]
    %v285 = vld [vmem:[#allocation8 + $0x60] sm:$0xff]
    %v286 = vld [vmem:[#allocation8 + $0x68] sm:$0xff]
    %v287 = vld [vmem:[#allocation8 + $0x70] sm:$0xff]
    %v288 = vld [vmem:[#allocation8 + $0x78] sm:$0xff]
    %v289 = vld [vmem:[#allocation8 + $0x80] sm:$0xff]
    %v290 = vld [vmem:[#allocation8 + $0x88] sm:$0xff]
    %v291 = vld [vmem:[#allocation8 + $0x90] sm:$0xff]
    %v292 = vld [vmem:[#allocation8 + $0x98] sm:$0xff]
    %v293 = vld [vmem:[#allocation8 + $0xa0] sm:$0xff]
    %v294 = vld [vmem:[#allocation8 + $0xa8] sm:$0xff]
    %v295 = vld [vmem:[#allocation8 + $0xb0] sm:$0xff]
    %v296 = vld [vmem:[#allocation8 + $0xb8] sm:$0xff]
    %v297 = vld [vmem:[#allocation8 + $0xc0] sm:$0xff]
    %v298 = vld [vmem:[#allocation8 + $0xc8] sm:$0xff]
    %v299 = vld [vmem:[#allocation8 + $0xd0] sm:$0xff]
    %v300 = vld [vmem:[#allocation8 + $0xd8] sm:$0xff]
    %v301 = vld [vmem:[#allocation8 + $0xe0] sm:$0xff]
    %v302 = vld [vmem:[#allocation8 + $0xe8] sm:$0xff]
    %v303 = vld [vmem:[#allocation8 + $0xf0] sm:$0xff]
    %v304 = vld [vmem:[#allocation8 + $0xf8] sm:$0xff]
    %v305 = vld [vmem:[#allocation8 + $0x100] sm:$0xff]
    %v306 = vld [vmem:[#allocation8 + $0x108] sm:$0xff]
    %v307 = vld [vmem:[#allocation8 + $0x110] sm:$0xff]
    %v308 = vld [vmem:[#allocation8 + $0x118] sm:$0xff]
    %v309 = vld [vmem:[#allocation8 + $0x120] sm:$0xff]
    %v310 = vld [vmem:[#allocation8 + $0x128] sm:$0xff]
    %v311 = vld [vmem:[#allocation8 + $0x130] sm:$0xff]
    %v312 = vld [vmem:[#allocation8 + $0x138] sm:$0xff]
    %v313 = vld [vmem:[#allocation8 + $0x140] sm:$0xff]
    %v314 = vld [vmem:[#allocation8 + $0x148] sm:$0xff]
    %v315 = vld [vmem:[#allocation8 + $0x150] sm:$0xff]
    %v316 = vld [vmem:[#allocation8 + $0x158] sm:$0xff]
    %v317 = vld [vmem:[#allocation8 + $0x160] sm:$0xff]
    %v318 = vld [vmem:[#allocation8 + $0x168] sm:$0xff]
    %v319 = vld [vmem:[#allocation8 + $0x170] sm:$0xff]
    %v320 = vld [vmem:[#allocation8 + $0x178] sm:$0xff]
    %v322 = vlaneseq
    %v323 = vshrl.u32 %v322, 7
    %v324 = vsub.s32 0, %v323
    %v325 = vrot.slane %v92, %v324
    %v326 = vlaneseq
    %v327 = vshrl.u32 %v326, 7
    %v328 = vsub.s32 1, %v327
    %v329 = vrot.slane %v92, %v328
    %v330 = vlaneseq
    %v331 = vshrl.u32 %v330, 7
    %v332 = vsub.s32 2, %v331
    %v333 = vrot.slane %v92, %v332
    %337 = vmatprep.subr.mxu0 %v274
    %338 = vmatpush1.msra.mxu0 %v273
    %339 = vmatprep.subr.mxu0 %v277
    %340 = vmatpush1.msra.mxu0 %v276
    %341 = vmatprep.subr.mxu0 %v280
    %342 = vmatpush1.msra.mxu0 %v279
    %343 = vmatprep.subr.mxu0 %v283
    %344 = vmatpush1.msra.mxu0 %v282
    %345 = vmatprep.subr.mxu0 %v286
    %346 = vmatpush1.msra.mxu0 %v285
    %347 = vmatprep.subr.mxu0 %v289
    %348 = vmatpush1.msra.mxu0 %v288
    %349 = vmatprep.subr.mxu0 %v292
    %350 = vmatpush1.msra.mxu0 %v291
    %351 = vmatprep.subr.mxu0 %v295
    %352 = vmatpush1.msra.mxu0 %v294
    %353 = vmatprep.subr.mxu0 %v298
    %354 = vmatpush1.msra.mxu0 %v297
    %355 = vmatprep.subr.mxu0 %v301
    %356 = vmatpush1.msra.mxu0 %v300
    %357 = vmatprep.subr.mxu0 %v304
    %358 = vmatpush1.msra.mxu0 %v303
    %359 = vmatprep.subr.mxu0 %v307
    %360 = vmatpush1.msra.mxu0 %v306
    %361 = vmatprep.subr.mxu0 %v310
    %362 = vmatpush1.msra.mxu0 %v309
    %363 = vmatprep.subr.mxu0 %v313
    %364 = vmatpush1.msra.mxu0 %v312
    %365 = vmatprep.subr.mxu0 %v316
    %366 = vmatpush1.msra.mxu0 %v315
    %367 = vmatprep.subr.mxu0 %v319
    %368 = vmatpush1.msra.mxu0 %v318
    %369 = vmatprep.subr.mxu0 0.0
    %370 = vmatpush1.msra.mxu0 0.0
    %371 = vmatprep.subr.mxu0 0.0
    %372 = vmatpush1.msra.mxu0 0.0
    %373 = vmatprep.subr.mxu0 0.0
    %374 = vmatpush1.msra.mxu0 0.0
    %375 = vmatprep.subr.mxu0 0.0
    %376 = vmatpush1.msra.mxu0 0.0
    %377 = vmatprep.subr.mxu0 0.0
    %378 = vmatpush1.msra.mxu0 0.0
    %379 = vmatprep.subr.mxu0 0.0
    %380 = vmatpush1.msra.mxu0 0.0
    %381 = vmatprep.subr.mxu0 0.0
    %382 = vmatpush1.msra.mxu0 0.0
    %383 = vmatprep.subr.mxu0 0.0
    %384 = vmatpush1.msra.mxu0 0.0
    %385 = vmatprep.subr.mxu0 0.0
    %386 = vmatpush1.msra.mxu0 0.0
    %387 = vmatprep.subr.mxu0 0.0
    %388 = vmatpush1.msra.mxu0 0.0
    %389 = vmatprep.subr.mxu0 0.0
    %390 = vmatpush1.msra.mxu0 0.0
    %391 = vmatprep.subr.mxu0 0.0
    %392 = vmatpush1.msra.mxu0 0.0
    %393 = vmatprep.subr.mxu0 0.0
    %394 = vmatpush1.msra.mxu0 0.0
    %395 = vmatprep.subr.mxu0 0.0
    %396 = vmatpush1.msra.mxu0 0.0
    %397 = vmatprep.subr.mxu0 0.0
    %398 = vmatpush1.msra.mxu0 0.0
    %399 = vmatprep.subr.mxu0 0.0
    %400 = vmatpush1.msra.mxu0 0.0
    %401 = vmatprep.mubr.f32.mxu0 0.0
    %402 = vmatmul.mubr.f32.gmra.mrb[0].mxu0 %v272
    %v403 = vpop.f32.mrb[0].mxu0
    %v404 = vadd.f32 %v325, %v403
    %v405 = vpop.f32.mrb[0].mxu0
    %v406 = vadd.f32 %v329, %v405
    %407 = vdwg.mxu0
    %408 = vmatprep.subr.mxu0 0.0
    %409 = vmatpush1.msra.mxu0 %v275
    %410 = vmatprep.subr.mxu0 0.0
    %411 = vmatpush1.msra.mxu0 %v278
    %412 = vmatprep.subr.mxu0 0.0
    %413 = vmatpush1.msra.mxu0 %v281
    %414 = vmatprep.subr.mxu0 0.0
    %415 = vmatpush1.msra.mxu0 %v284
    %416 = vmatprep.subr.mxu0 0.0
    %417 = vmatpush1.msra.mxu0 %v287
    %418 = vmatprep.subr.mxu0 0.0
    %419 = vmatpush1.msra.mxu0 %v290
    %420 = vmatprep.subr.mxu0 0.0
    %421 = vmatpush1.msra.mxu0 %v293
    %422 = vmatprep.subr.mxu0 0.0
    %423 = vmatpush1.msra.mxu0 %v296
    %424 = vmatprep.subr.mxu0 0.0
    %425 = vmatpush1.msra.mxu0 %v299
    %426 = vmatprep.subr.mxu0 0.0
    %427 = vmatpush1.msra.mxu0 %v302
    %428 = vmatprep.subr.mxu0 0.0
    %429 = vmatpush1.msra.mxu0 %v305
    %430 = vmatprep.subr.mxu0 0.0
    %431 = vmatpush1.msra.mxu0 %v308
    %432 = vmatprep.subr.mxu0 0.0
    %433 = vmatpush1.msra.mxu0 %v311
    %434 = vmatprep.subr.mxu0 0.0
    %435 = vmatpush1.msra.mxu0 %v314
    %436 = vmatprep.subr.mxu0 0.0
    %437 = vmatpush1.msra.mxu0 %v317
    %438 = vmatprep.subr.mxu0 0.0
    %439 = vmatpush1.msra.mxu0 %v320
    %440 = vmatprep.subr.mxu0 0.0
    %441 = vmatpush1.msra.mxu0 0.0
    %442 = vmatprep.subr.mxu0 0.0
    %443 = vmatpush1.msra.mxu0 0.0
    %444 = vmatprep.subr.mxu0 0.0
    %445 = vmatpush1.msra.mxu0 0.0
    %446 = vmatprep.subr.mxu0 0.0
    %447 = vmatpush1.msra.mxu0 0.0
    %448 = vmatprep.subr.mxu0 0.0
    %449 = vmatpush1.msra.mxu0 0.0
    %450 = vmatprep.subr.mxu0 0.0
    %451 = vmatpush1.msra.mxu0 0.0
    %452 = vmatprep.subr.mxu0 0.0
    %453 = vmatpush1.msra.mxu0 0.0
    %454 = vmatprep.subr.mxu0 0.0
    %455 = vmatpush1.msra.mxu0 0.0
    %456 = vmatprep.subr.mxu0 0.0
    %457 = vmatpush1.msra.mxu0 0.0
    %458 = vmatprep.subr.mxu0 0.0
    %459 = vmatpush1.msra.mxu0 0.0
    %460 = vmatprep.subr.mxu0 0.0
    %461 = vmatpush1.msra.mxu0 0.0
    %462 = vmatprep.subr.mxu0 0.0
    %463 = vmatpush1.msra.mxu0 0.0
    %464 = vmatprep.subr.mxu0 0.0
    %465 = vmatpush1.msra.mxu0 0.0
    %466 = vmatprep.subr.mxu0 0.0
    %467 = vmatpush1.msra.mxu0 0.0
    %468 = vmatprep.subr.mxu0 0.0
    %469 = vmatpush1.msra.mxu0 0.0
    %470 = vmatprep.subr.mxu0 0.0
    %471 = vmatpush1.msra.mxu0 0.0
    %472 = vmatprep.mubr.f32.mxu0 0.0
    %473 = vmatmul.mubr.f32.gmra.mrb[0].mxu0 %v272
    %v474 = vpop.f32.mrb[0].mxu0
    %v475 = vadd.f32 %v333, %v474
    %v476 = vpop.f32.mrb[0].mxu0
    %477 = vdwg.mxu0
    %v478 = vmax.f32 %v404, 0.0
    %v479 = vmax.f32 %v406, 0.0
    %v480 = vmax.f32 %v475, 0.0
    %v481 = vld [vmem:[#allocation10] sm:$0xff]
    %v482 = vld [vmem:[#allocation10 + $0x8] sm:$0xff]
    %v483 = vld [vmem:[#allocation10 + $0x10] sm:$0xff]
    %v484 = vld [vmem:[#allocation10 + $0x18] sm:$0xff]
    %v485 = vld [vmem:[#allocation10 + $0x20] sm:$0xff]
    %v486 = vld [vmem:[#allocation10 + $0x28] sm:$0xff]
    %v487 = vld [vmem:[#allocation10 + $0x30] sm:$0xff]
    %v488 = vld [vmem:[#allocation10 + $0x38] sm:$0xff]
    %v489 = vld [vmem:[#allocation10 + $0x40] sm:$0xff]
    %v490 = vld [vmem:[#allocation10 + $0x48] sm:$0xff]
    %v491 = vld [vmem:[#allocation10 + $0x50] sm:$0xff]
    %v492 = vld [vmem:[#allocation10 + $0x58] sm:$0xff]
    %v493 = vld [vmem:[#allocation10 + $0x60] sm:$0xff]
    %v494 = vld [vmem:[#allocation10 + $0x68] sm:$0xff]
    %v495 = vld [vmem:[#allocation10 + $0x70] sm:$0xff]
    %v496 = vld [vmem:[#allocation10 + $0x78] sm:$0xff]
    %v497 = vld [vmem:[#allocation10 + $0x80] sm:$0xff]
    %v498 = vld [vmem:[#allocation10 + $0x88] sm:$0xff]
    %v499 = vld [vmem:[#allocation10 + $0x90] sm:$0xff]
    %v500 = vld [vmem:[#allocation10 + $0x98] sm:$0xff]
    %v501 = vld [vmem:[#allocation10 + $0xa0] sm:$0xff]
    %v502 = vld [vmem:[#allocation10 + $0xa8] sm:$0xff]
    %v503 = vld [vmem:[#allocation10 + $0xb0] sm:$0xff]
    %v504 = vld [vmem:[#allocation10 + $0xb8] sm:$0xff]
    %v505 = vld [vmem:[#allocation10 + $0xc0] sm:$0xff]
    %v506 = vld [vmem:[#allocation10 + $0xc8] sm:$0xff]
    %v507 = vld [vmem:[#allocation10 + $0xd0] sm:$0xff]
    %v508 = vld [vmem:[#allocation10 + $0xd8] sm:$0xff]
    %v509 = vld [vmem:[#allocation10 + $0xe0] sm:$0xff]
    %v510 = vld [vmem:[#allocation10 + $0xe8] sm:$0xff]
    %v511 = vld [vmem:[#allocation10 + $0xf0] sm:$0xff]
    %v512 = vld [vmem:[#allocation10 + $0xf8] sm:$0xff]
    %v513 = vld [vmem:[#allocation10 + $0x100] sm:$0xff]
    %v514 = vld [vmem:[#allocation10 + $0x108] sm:$0xff]
    %v515 = vld [vmem:[#allocation10 + $0x110] sm:$0xff]
    %v516 = vld [vmem:[#allocation10 + $0x118] sm:$0xff]
    %v517 = vld [vmem:[#allocation10 + $0x120] sm:$0xff]
    %v518 = vld [vmem:[#allocation10 + $0x128] sm:$0xff]
    %v519 = vld [vmem:[#allocation10 + $0x130] sm:$0xff]
    %v520 = vld [vmem:[#allocation10 + $0x138] sm:$0xff]
    %v521 = vld [vmem:[#allocation10 + $0x140] sm:$0xff]
    %v522 = vld [vmem:[#allocation10 + $0x148] sm:$0xff]
    %v523 = vld [vmem:[#allocation10 + $0x150] sm:$0xff]
    %v524 = vld [vmem:[#allocation10 + $0x158] sm:$0xff]
    %v525 = vld [vmem:[#allocation10 + $0x160] sm:$0xff]
    %v526 = vld [vmem:[#allocation10 + $0x168] sm:$0xff]
    %v527 = vld [vmem:[#allocation10 + $0x170] sm:$0xff]
    %v528 = vld [vmem:[#allocation10 + $0x178] sm:$0xff]
    %v530 = vlaneseq
    %v531 = vshrl.u32 %v530, 7
    %v532 = vsub.s32 0, %v531
    %v533 = vrot.slane %v93, %v532
    %535 = vmatprep.subr.mxu0 0.0
    %536 = vmatpush1.msra.mxu0 %v481
    %537 = vmatprep.subr.mxu0 0.0
    %538 = vmatpush1.msra.mxu0 %v482
    %539 = vmatprep.subr.mxu0 0.0
    %540 = vmatpush1.msra.mxu0 %v483
    %541 = vmatprep.subr.mxu0 0.0
    %542 = vmatpush1.msra.mxu0 %v484
    %543 = vmatprep.subr.mxu0 0.0
    %544 = vmatpush1.msra.mxu0 %v485
    %545 = vmatprep.subr.mxu0 0.0
    %546 = vmatpush1.msra.mxu0 %v486
    %547 = vmatprep.subr.mxu0 0.0
    %548 = vmatpush1.msra.mxu0 %v487
    %549 = vmatprep.subr.mxu0 0.0
    %550 = vmatpush1.msra.mxu0 %v488
    %551 = vmatprep.subr.mxu0 0.0
    %552 = vmatpush1.msra.mxu0 %v489
    %553 = vmatprep.subr.mxu0 0.0
    %554 = vmatpush1.msra.mxu0 %v490
    %555 = vmatprep.subr.mxu0 0.0
    %556 = vmatpush1.msra.mxu0 %v491
    %557 = vmatprep.subr.mxu0 0.0
    %558 = vmatpush1.msra.mxu0 %v492
    %559 = vmatprep.subr.mxu0 0.0
    %560 = vmatpush1.msra.mxu0 %v493
    %561 = vmatprep.subr.mxu0 0.0
    %562 = vmatpush1.msra.mxu0 %v494
    %563 = vmatprep.subr.mxu0 0.0
    %564 = vmatpush1.msra.mxu0 %v495
    %565 = vmatprep.subr.mxu0 0.0
    %566 = vmatpush1.msra.mxu0 %v496
    %567 = vmatprep.subr.mxu0 0.0
    %568 = vmatpush1.msra.mxu0 %v497
    %569 = vmatprep.subr.mxu0 0.0
    %570 = vmatpush1.msra.mxu0 %v498
    %571 = vmatprep.subr.mxu0 0.0
    %572 = vmatpush1.msra.mxu0 %v499
    %573 = vmatprep.subr.mxu0 0.0
    %574 = vmatpush1.msra.mxu0 %v500
    %575 = vmatprep.subr.mxu0 0.0
    %576 = vmatpush1.msra.mxu0 %v501
    %577 = vmatprep.subr.mxu0 0.0
    %578 = vmatpush1.msra.mxu0 %v502
    %579 = vmatprep.subr.mxu0 0.0
    %580 = vmatpush1.msra.mxu0 %v503
    %581 = vmatprep.subr.mxu0 0.0
    %582 = vmatpush1.msra.mxu0 %v504
    %583 = vmatprep.subr.mxu0 0.0
    %584 = vmatpush1.msra.mxu0 %v505
    %585 = vmatprep.subr.mxu0 0.0
    %586 = vmatpush1.msra.mxu0 %v506
    %587 = vmatprep.subr.mxu0 0.0
    %588 = vmatpush1.msra.mxu0 %v507
    %589 = vmatprep.subr.mxu0 0.0
    %590 = vmatpush1.msra.mxu0 %v508
    %591 = vmatprep.subr.mxu0 0.0
    %592 = vmatpush1.msra.mxu0 %v509
    %593 = vmatprep.subr.mxu0 0.0
    %594 = vmatpush1.msra.mxu0 %v510
    %595 = vmatprep.subr.mxu0 0.0
    %596 = vmatpush1.msra.mxu0 %v511
    %597 = vmatprep.subr.mxu0 0.0
    %598 = vmatpush1.msra.mxu0 %v512
    %599 = vmatprep.mubr.f32.mxu0 %v479
    %600 = vmatmul.mubr.f32.gmra.mrb[0].mxu0 %v478
    %v601 = vpop.f32.mrb[0].mxu0
    %v602 = vadd.f32 %v533, %v601
    %v603 = vpop.f32.mrb[0].mxu0
    %604 = vdwg.mxu0
    %605 = vmatprep.subr.mxu0 0.0
    %606 = vmatpush1.msra.mxu0 %v513
    %607 = vmatprep.subr.mxu0 0.0
    %608 = vmatpush1.msra.mxu0 %v514
    %609 = vmatprep.subr.mxu0 0.0
    %610 = vmatpush1.msra.mxu0 %v515
    %611 = vmatprep.subr.mxu0 0.0
    %612 = vmatpush1.msra.mxu0 %v516
    %613 = vmatprep.subr.mxu0 0.0
    %614 = vmatpush1.msra.mxu0 %v517
    %615 = vmatprep.subr.mxu0 0.0
    %616 = vmatpush1.msra.mxu0 %v518
    %617 = vmatprep.subr.mxu0 0.0
    %618 = vmatpush1.msra.mxu0 %v519
    %619 = vmatprep.subr.mxu0 0.0
    %620 = vmatpush1.msra.mxu0 %v520
    %621 = vmatprep.subr.mxu0 0.0
    %622 = vmatpush1.msra.mxu0 %v521
    %623 = vmatprep.subr.mxu0 0.0
    %624 = vmatpush1.msra.mxu0 %v522
    %625 = vmatprep.subr.mxu0 0.0
    %626 = vmatpush1.msra.mxu0 %v523
    %627 = vmatprep.subr.mxu0 0.0
    %628 = vmatpush1.msra.mxu0 %v524
    %629 = vmatprep.subr.mxu0 0.0
    %630 = vmatpush1.msra.mxu0 %v525
    %631 = vmatprep.subr.mxu0 0.0
    %632 = vmatpush1.msra.mxu0 %v526
    %633 = vmatprep.subr.mxu0 0.0
    %634 = vmatpush1.msra.mxu0 %v527
    %635 = vmatprep.subr.mxu0 0.0
    %636 = vmatpush1.msra.mxu0 %v528
    %637 = vmatprep.subr.mxu0 0.0
    %638 = vmatpush1.msra.mxu0 0.0
    %639 = vmatprep.subr.mxu0 0.0
    %640 = vmatpush1.msra.mxu0 0.0
    %641 = vmatprep.subr.mxu0 0.0
    %642 = vmatpush1.msra.mxu0 0.0
    %643 = vmatprep.subr.mxu0 0.0
    %644 = vmatpush1.msra.mxu0 0.0
    %645 = vmatprep.subr.mxu0 0.0
    %646 = vmatpush1.msra.mxu0 0.0
    %647 = vmatprep.subr.mxu0 0.0
    %648 = vmatpush1.msra.mxu0 0.0
    %649 = vmatprep.subr.mxu0 0.0
    %650 = vmatpush1.msra.mxu0 0.0
    %651 = vmatprep.subr.mxu0 0.0
    %652 = vmatpush1.msra.mxu0 0.0
    %653 = vmatprep.subr.mxu0 0.0
    %654 = vmatpush1.msra.mxu0 0.0
    %655 = vmatprep.subr.mxu0 0.0
    %656 = vmatpush1.msra.mxu0 0.0
    %657 = vmatprep.subr.mxu0 0.0
    %658 = vmatpush1.msra.mxu0 0.0
    %659 = vmatprep.subr.mxu0 0.0
    %660 = vmatpush1.msra.mxu0 0.0
    %661 = vmatprep.subr.mxu0 0.0
    %662 = vmatpush1.msra.mxu0 0.0
    %663 = vmatprep.subr.mxu0 0.0
    %664 = vmatpush1.msra.mxu0 0.0
    %665 = vmatprep.subr.mxu0 0.0
    %666 = vmatpush1.msra.mxu0 0.0
    %667 = vmatprep.subr.mxu0 0.0
    %668 = vmatpush1.msra.mxu0 0.0
    %669 = vmatprep.mubr.f32.mxu0 0.0
    %670 = vmatmul.mubr.f32.gmra.mrb[0].mxu0 %v480
    %v671 = vpop.f32.mrb[0].mxu0
    %v672 = vadd.f32 %v602, %v671
    %v673 = vpop.f32.mrb[0].mxu0
    %674 = vdwg.mxu0
    %675 = vst [vmem:[#allocation11] sm:$0xff] %v672
    // Predicated region
    $region46: #{tpu_custom_call.1} parent=1 // pred_check
      _
    $region47: #{tpu_custom_call.1} parent=1 // pred_check_branch
      %677 = sbr.rel (0) target = $region49
    $region48: #{tpu_custom_call.1} parent=1 // pred_region
      %s679 = ssub.s32 128, 128
      %680 = vsyncadd [#allocation4], %s679
      %s682 = sshll.u32 [#allocation11], 4
      %s683 = int_to_ptr.vmem [resolvable:$true] %s682
      %685 = dma.vmem_to_hbm [thread:$0]  %s683, 128, %s6, [#allocation4]
    $region49: #{tpu_custom_call.1} parent=1 // pred_fallthru
      _
    // Predicated region
    $region50: #{tpu_custom_call.1} parent=1 // pred_check
      _
    $region51: #{tpu_custom_call.1} parent=1 // pred_check_branch
      %687 = sbr.rel (0) target = $region53
    $region52: #{tpu_custom_call.1} parent=1 // pred_region
      %688 = dma.done [#allocation4], 128
    $region53: #{tpu_custom_call.1} parent=1 // pred_fallthru
      _
    %689 = vsyncpa [#allocation3], 1
    %690 = vsyncpa [#allocation6], 1
    %691 = vsyncpa [#allocation9], 1
    %692 = vsyncpa [#allocation4], 1

</llo_original>
